<compile_context>
chip_gen: v7x
topology: tpu7x:2x2x1
jax: 0.10.0
libtpu: 0.0.40
codegen_flags: <defaults>
</compile_context>

<pallas_src>
import functools

import jax
import jax.numpy as jnp
from jax.experimental import pallas as pl
from jax.experimental.pallas import tpu as pltpu


def _round_up(x, m):
    return (x + m - 1) // m * m


def _cdiv(a, b):
    return -(-a // b)


def _vmem_cap_bytes():
    # Generation-aware VMEM budget: ~3/4 of physical VMEM (v5e/v6e 128 MiB -> 96 MiB,
    # v7x 64 MiB -> 48 MiB).  Falls back to the v7x-safe 48 MiB if the query fails.
    try:
        cap = int(pltpu.get_tpu_info().vmem_capacity_bytes)
        return max(16 << 20, min(cap * 3 // 4, 96 << 20))
    except Exception:
        return 48 << 20


def _choose_tm(m, k, n, in_item, out_item, cap):
    """Largest M tile whose working set fits `cap`, preferring an even (or single)
    M-tile count so v7x's two TensorCores split the 'parallel' axis evenly."""
    limit = max(8, _round_up(m, 8))
    cands = [t for t in (1024, 512, 256, 128, 64, 32, 16, 8) if t <= limit]

    def need(tm):
        return (2 * tm * k * in_item        # double-buffered patch tiles
                + 2 * k * n * in_item       # resident weight (conservative 2 buffers)
                + 2 * n * 4                 # resident bias (f32)
                + 2 * tm * n * out_item)    # double-buffered output tiles

    fitting = [t for t in cands if need(t) <= cap] or [8]
    for t in fitting:
        nt = _cdiv(m, t)
        if nt == 1 or nt % 2 == 0:
            return t, need(t)
    return fitting[0], need(fitting[0])


# ------------------------- Pallas kernel (hot path) ---------------------------
# relu(P @ W + b): one full-K MXU pass per M tile, f32 accumulation inside jnp.dot,
# bias + ReLU epilogue, lane-dense output stores.  W and b stay VMEM-resident.

def _mm_bias_relu_kernel(p_ref, w_ref, b_ref, o_ref):
    acc = jnp.dot(p_ref[...], w_ref[...], preferred_element_type=jnp.float32)
    o_ref[...] = jnp.maximum(acc + b_ref[...], 0.0).astype(o_ref.dtype)


def matmul_bias_relu(p, w, b, *, out_dtype=None):
    """relu(p @ w + b), tiled over M only.  p:(M,K), w:(K,N), b:(1,N) f32, N % 128 == 0.

    K is taken full-extent (no K grid, no K padding pass); the weight and bias use
    constant index_maps so they are fetched to VMEM once for the whole grid.
    """
    m, k = p.shape
    kw, n = w.shape
    assert k == kw and b.shape == (1, n) and n % 128 == 0
    out_dtype = out_dtype or p.dtype
    in_item = jnp.dtype(p.dtype).itemsize
    out_item = jnp.dtype(out_dtype).itemsize

    cap = _vmem_cap_bytes()
    tm, need = _choose_tm(m, k, n, in_item, out_item, cap)
    m_pad = _round_up(m, tm)
    if m_pad != m:
        p = jnp.pad(p, ((0, m_pad - m), (0, 0)))
    vmem_limit = int(min(max(need + (4 << 20), 8 << 20), cap))

    out = pl.pallas_call(
        _mm_bias_relu_kernel,
        out_shape=jax.ShapeDtypeStruct((m_pad, n), out_dtype),
        grid_spec=pltpu.PrefetchScalarGridSpec(
            num_scalar_prefetch=0,
            grid=(m_pad // tm,),
            in_specs=[
                pl.BlockSpec((tm, k), lambda i: (i, 0)),   # patch tile (streamed)
                pl.BlockSpec((k, n), lambda i: (0, 0)),    # weight (VMEM-resident)
                pl.BlockSpec((1, n), lambda i: (0, 0)),    # bias   (VMEM-resident)
            ],
            out_specs=pl.BlockSpec((tm, n), lambda i: (i, 0)),
        ),
        compiler_params=pltpu.CompilerParams(
            dimension_semantics=("parallel",),             # megacore / dual-TC sharding
            vmem_limit_bytes=vmem_limit,
        ),
    )(p, w, b)
    return out[:m] if m_pad != m else out


# ------------------------------- JAX glue --------------------------------------

def extract_patches(x, k, stride, pad, extra=None):
    # (N,H,W,C) -> (N,Ho,Wo,k*k*C [+C_extra]); tap order (dy,dx), channels contiguous.
    # Taps and the optional residual features are built with ONE concatenate.
    n, h, w, c = x.shape
    xp = jnp.pad(x, ((0, 0), (pad, pad), (pad, pad), (0, 0)))
    ho = (h + 2 * pad - k) // stride + 1
    wo = (w + 2 * pad - k) // stride + 1
    taps = [xp[:, dy:dy + stride * ho:stride, dx:dx + stride * wo:stride, :]
            for dy in range(k) for dx in range(k)]
    if extra is not None:
        taps.append(extra)
    return jnp.concatenate(taps, axis=-1)


def fold_bn(w_oihw, gamma, beta, mean, var, eps=1e-5):
    # eval-mode BatchNorm folded into the preceding bias-free conv
    s = gamma / jnp.sqrt(var + eps)
    return w_oihw * s[:, None, None, None], beta - mean * s


def w_to_mat(w_oihw):
    # (Cout, Cin, kH, kW) -> (kH*kW*Cin, Cout), matching extract_patches tap order.
    cout = w_oihw.shape[0]
    return jnp.transpose(w_oihw, (2, 3, 1, 0)).reshape(-1, cout)


def build_params(raw, cin, cout, compute_dtype):
    # Fold BN, pad only the output-channel (lane) dim to 128, pre-cast ONCE.
    w1f, b1 = fold_bn(raw["w1"], *raw["bn1"])
    w2f, b2 = fold_bn(raw["w2"], *raw["bn2"])
    wrf, br = fold_bn(raw["wr"], *raw["bnr"])

    n_pad = _round_up(cout, 128)

    def pad_n(mat):
        return jnp.pad(mat, ((0, 0), (0, n_pad - cout)))

    w1m = pad_n(w_to_mat(w1f)).astype(compute_dtype)
    wfm = pad_n(jnp.concatenate([w_to_mat(w2f), w_to_mat(wrf)], axis=0)).astype(compute_dtype)
    b1p = jnp.pad(b1, (0, n_pad - cout)).reshape(1, n_pad).astype(jnp.float32)
    bfp = jnp.pad(b2 + br, (0, n_pad - cout)).reshape(1, n_pad).astype(jnp.float32)
    return {"w1m": w1m, "b1": b1p, "wfm": wfm, "bf": bfp}


@functools.partial(jax.jit, static_argnames=("stride", "cout"))
def block_forward(x_nhwc, w1m, b1, wfm, bf, *, stride, cout):
    # relu( BN2(conv2(relu(BN1(conv1(x))))) + BNr(convr(x)) ), eval mode.
    cd = w1m.dtype
    x = x_nhwc.astype(cd)                        # single up-front cast
    n = x.shape[0]

    # conv1 (3x3, stride) + BN1 + ReLU as one matmul.
    p1 = extract_patches(x, 3, stride, 1)
    ho, wo = p1.shape[1], p1.shape[2]
    m = n * ho * wo
    o1 = matmul_bias_relu(p1.reshape(m, -1), w1m, b1)

    # conv2 (3x3, s1) + BN2 fused with the 1x1(stride)+BNr stage residual and the final
    # ReLU as ONE matmul via K-concatenation: [taps(o1) | x_strided] @ [[W2],[Wr]].
    o1_img = o1[:, :cout].reshape(n, ho, wo, cout)
    xs = x[:, ::stride, ::stride, :]
    pf = extract_patches(o1_img, 3, 1, 1, extra=xs).reshape(m, -1)
    out = matmul_bias_relu(pf, wfm, bf)
    return out[:, :cout].reshape(n, ho, wo, cout)


def ref_forward(x_nhwc, raw, stride, eps=1e-5):
    # pure-JAX reference (lax conv) for correctness check
    def conv(x, w_oihw, s, p):
        return jax.lax.conv_general_dilated(
            x, jnp.transpose(w_oihw, (2, 3, 1, 0)), (s, s), [(p, p), (p, p)],
            dimension_numbers=("NHWC", "HWIO", "NHWC"))

    def bn(y, g, b, m, v):
        return (y - m) / jnp.sqrt(v + eps) * g + b

    h = jax.nn.relu(bn(conv(x_nhwc, raw["w1"], stride, 1), *raw["bn1"]))
    h = bn(conv(h, raw["w2"], 1, 1), *raw["bn2"])
    r = bn(conv(x_nhwc, raw["wr"], stride, 0), *raw["bnr"])
    return jax.nn.relu(h + r)


# --------------------------------- main -----------------------------------------

def _make_raw(key, cin, cout):
    ks = jax.random.split(key, 6)

    def bn_params(k, c):
        k1, k2, k3, k4 = jax.random.split(k, 4)
        return (1.0 + 0.1 * jax.random.normal(k1, (c,), jnp.float32),
                0.1 * jax.random.normal(k2, (c,), jnp.float32),
                0.1 * jax.random.normal(k3, (c,), jnp.float32),
                jax.random.uniform(k4, (c,), jnp.float32, 0.5, 1.5))

    return {
        "w1": 0.2 * jax.random.normal(ks[0], (cout, cin, 3, 3), jnp.float32),
        "bn1": bn_params(ks[1], cout),
        "w2": 0.2 * jax.random.normal(ks[2], (cout, cout, 3, 3), jnp.float32),
        "bn2": bn_params(ks[3], cout),
        "wr": 0.2 * jax.random.normal(ks[4], (cout, cin, 1, 1), jnp.float32),
        "bnr": bn_params(ks[5], cout),
    }


def _check(x_nchw, raw, cin, cout, stride, compute_dtype, strict):
    x = jnp.transpose(x_nchw, (0, 2, 3, 1))          # NCHW -> NHWC for the kernels
    params = build_params(raw, cin, cout, compute_dtype)
    out = jax.block_until_ready(
        block_forward(x, params["w1m"], params["b1"], params["wfm"], params["bf"],
                      stride=stride, cout=cout))
    ref = jax.block_until_ready(ref_forward(x, raw, stride))
    assert out.shape == ref.shape, (out.shape, ref.shape)
    if strict:
        assert jnp.allclose(out, ref, atol=1e-3, rtol=1e-3), "f32 mismatch vs reference"
    else:
        err = float(jnp.max(jnp.abs(out.astype(jnp.float32) - ref)))
        scale = float(jnp.max(jnp.abs(ref))) + 1.0
        assert err / scale < 0.03, f"bf16 error too large: {err} (ref scale {scale})"


if __name__ == "__main__":
    key = jax.random.PRNGKey(0)
    k1, k2, k3, k4 = jax.random.split(key, 4)
    stride = 2

    # --- case 1: module-spec toy shape (single M tile) ---
    N, Cin, H, W, Cout = 2, 4, 16, 16, 8
    x1 = jax.random.normal(k1, (N, Cin, H, W), jnp.float32)   # PyTorch NCHW convention
    raw1 = _make_raw(k2, Cin, Cout)
    _check(x1, raw1, Cin, Cout, stride, jnp.float32, strict=True)   # strict f32 check
    _check(x1, raw1, Cin, Cout, stride, jnp.bfloat16, strict=False) # bf16 production path

    # --- case 2: larger shape exercising multiple (padded) M tiles ---
    N2, Cin2, H2, W2, Cout2 = 2, 16, 24, 24, 32
    x2 = jax.random.normal(k3, (N2, Cin2, H2, W2), jnp.float32)
    raw2 = _make_raw(k4, Cin2, Cout2)
    _check(x2, raw2, Cin2, Cout2, stride, jnp.float32, strict=True)
    _check(x2, raw2, Cin2, Cout2, stride, jnp.bfloat16, strict=False)

    # TODO(synk): training-time stochastic block dropout (self.training branch with
    # host-side np.random) is not implemented; eval-mode semantics only.
    print("KERNEL_OK")
</pallas_src>

<mosaic_0001>
module attributes {stable_mosaic.version = 11 : i64} {
  func.func @_mm_bias_relu_kernel(%arg0: i32, %arg1: memref<128x36xf32, #tpu.memory_space<vmem>>, %arg2: memref<36x128xf32, #tpu.memory_space<vmem>>, %arg3: memref<1x128xf32, #tpu.memory_space<vmem>>, %arg4: memref<128x128xf32, #tpu.memory_space<vmem>>) attributes {dimension_semantics = [#tpu.dimension_semantics<parallel>], iteration_bounds = array<i64: 1>, scalar_prefetch = 0 : i64, scratch_operands = 0 : i64, tpu.core_type = #tpu.core_type<tc>, window_params = [{transform_indices = @transform_0, window_bounds = array<i64: 128, 36>}, {pipeline_mode = #tpu.pipeline_mode<synchronous>, transform_indices = @transform_1, window_bounds = array<i64: 36, 128>}, {pipeline_mode = #tpu.pipeline_mode<synchronous>, transform_indices = @transform_2, window_bounds = array<i64: 1, 128>}, {transform_indices = @transform_3, window_bounds = array<i64: 128, 128>}]} {
    %c0 = arith.constant 0 : index
    %c0_0 = arith.constant 0 : index
    %0 = vector.load %arg1[%c0, %c0_0] : memref<128x36xf32, #tpu.memory_space<vmem>>, vector<128x36xf32>
    %c0_1 = arith.constant 0 : index
    %c0_2 = arith.constant 0 : index
    %1 = vector.load %arg2[%c0_1, %c0_2] : memref<36x128xf32, #tpu.memory_space<vmem>>, vector<36x128xf32>
    %cst = arith.constant dense<0.000000e+00> : vector<128x128xf32>
    %2 = tpu.matmul %0, %1, %cst {dimension_numbers = #tpu.dot_dimension_numbers<[1], [0], [0], [1], [0, 0, 1, 1], [], []>} : vector<128x36xf32>, vector<36x128xf32>, vector<128x128xf32> -> vector<128x128xf32>
    %c0_3 = arith.constant 0 : index
    %c0_4 = arith.constant 0 : index
    %3 = vector.load %arg3[%c0_3, %c0_4] : memref<1x128xf32, #tpu.memory_space<vmem>>, vector<1x128xf32>
    %4 = vector.broadcast %3 : vector<1x128xf32> to vector<128x128xf32>
    %5 = arith.addf %2, %4 : vector<128x128xf32>
    %cst_5 = arith.constant 0.000000e+00 : f32
    %6 = vector.broadcast %cst_5 : f32 to vector<128x128xf32>
    %7 = arith.maximumf %5, %6 : vector<128x128xf32>
    %c0_6 = arith.constant 0 : index
    %c0_7 = arith.constant 0 : index
    %8 = vector.load %arg4[%c0_6, %c0_7] : memref<128x128xf32, #tpu.memory_space<vmem>>, vector<128x128xf32>
    tpu.vector_store %arg4[%c0_6, %c0_7], %7 {strides = array<i32>} : memref<128x128xf32, #tpu.memory_space<vmem>>, vector<128x128xf32>,
    return
  }
  func.func @transform_0(%arg0: i32) -> (i32, i32) {
    %c0_i32 = arith.constant 0 : i32
    %c0_i32_0 = arith.constant 0 : i32
    return %arg0, %c0_i32 : i32, i32
  }
  func.func @transform_1(%arg0: i32) -> (i32, i32) {
    %c0_i32 = arith.constant 0 : i32
    %c0_i32_0 = arith.constant 0 : i32
    %c0_i32_1 = arith.constant 0 : i32
    return %c0_i32, %c0_i32_0 : i32, i32
  }
  func.func @transform_2(%arg0: i32) -> (i32, i32) {
    %c0_i32 = arith.constant 0 : i32
    %c0_i32_0 = arith.constant 0 : i32
    %c0_i32_1 = arith.constant 0 : i32
    return %c0_i32, %c0_i32_0 : i32, i32
  }
  func.func @transform_3(%arg0: i32) -> (i32, i32) {
    %c0_i32 = arith.constant 0 : i32
    %c0_i32_0 = arith.constant 0 : i32
    return %arg0, %c0_i32 : i32, i32
  }
}

module attributes {stable_mosaic.version = 11 : i64} {
  func.func @_mm_bias_relu_kernel(%arg0: i32, %arg1: memref<128x76xf32, #tpu.memory_space<vmem>>, %arg2: memref<76x128xf32, #tpu.memory_space<vmem>>, %arg3: memref<1x128xf32, #tpu.memory_space<vmem>>, %arg4: memref<128x128xf32, #tpu.memory_space<vmem>>) attributes {dimension_semantics = [#tpu.dimension_semantics<parallel>], iteration_bounds = array<i64: 1>, scalar_prefetch = 0 : i64, scratch_operands = 0 : i64, tpu.core_type = #tpu.core_type<tc>, window_params = [{transform_indices = @transform_0, window_bounds = array<i64: 128, 76>}, {pipeline_mode = #tpu.pipeline_mode<synchronous>, transform_indices = @transform_1, window_bounds = array<i64: 76, 128>}, {pipeline_mode = #tpu.pipeline_mode<synchronous>, transform_indices = @transform_2, window_bounds = array<i64: 1, 128>}, {transform_indices = @transform_3, window_bounds = array<i64: 128, 128>}]} {
    %c0 = arith.constant 0 : index
    %c0_0 = arith.constant 0 : index
    %0 = vector.load %arg1[%c0, %c0_0] : memref<128x76xf32, #tpu.memory_space<vmem>>, vector<128x76xf32>
    %c0_1 = arith.constant 0 : index
    %c0_2 = arith.constant 0 : index
    %1 = vector.load %arg2[%c0_1, %c0_2] : memref<76x128xf32, #tpu.memory_space<vmem>>, vector<76x128xf32>
    %cst = arith.constant dense<0.000000e+00> : vector<128x128xf32>
    %2 = tpu.matmul %0, %1, %cst {dimension_numbers = #tpu.dot_dimension_numbers<[1], [0], [0], [1], [0, 0, 1, 1], [], []>} : vector<128x76xf32>, vector<76x128xf32>, vector<128x128xf32> -> vector<128x128xf32>
    %c0_3 = arith.constant 0 : index
    %c0_4 = arith.constant 0 : index
    %3 = vector.load %arg3[%c0_3, %c0_4] : memref<1x128xf32, #tpu.memory_space<vmem>>, vector<1x128xf32>
    %4 = vector.broadcast %3 : vector<1x128xf32> to vector<128x128xf32>
    %5 = arith.addf %2, %4 : vector<128x128xf32>
    %cst_5 = arith.constant 0.000000e+00 : f32
    %6 = vector.broadcast %cst_5 : f32 to vector<128x128xf32>
    %7 = arith.maximumf %5, %6 : vector<128x128xf32>
    %c0_6 = arith.constant 0 : index
    %c0_7 = arith.constant 0 : index
    %8 = vector.load %arg4[%c0_6, %c0_7] : memref<128x128xf32, #tpu.memory_space<vmem>>, vector<128x128xf32>
    tpu.vector_store %arg4[%c0_6, %c0_7], %7 {strides = array<i32>} : memref<128x128xf32, #tpu.memory_space<vmem>>, vector<128x128xf32>,
    return
  }
  func.func @transform_0(%arg0: i32) -> (i32, i32) {
    %c0_i32 = arith.constant 0 : i32
    %c0_i32_0 = arith.constant 0 : i32
    return %arg0, %c0_i32 : i32, i32
  }
  func.func @transform_1(%arg0: i32) -> (i32, i32) {
    %c0_i32 = arith.constant 0 : i32
    %c0_i32_0 = arith.constant 0 : i32
    %c0_i32_1 = arith.constant 0 : i32
    return %c0_i32, %c0_i32_0 : i32, i32
  }
  func.func @transform_2(%arg0: i32) -> (i32, i32) {
    %c0_i32 = arith.constant 0 : i32
    %c0_i32_0 = arith.constant 0 : i32
    %c0_i32_1 = arith.constant 0 : i32
    return %c0_i32, %c0_i32_0 : i32, i32
  }
  func.func @transform_3(%arg0: i32) -> (i32, i32) {
    %c0_i32 = arith.constant 0 : i32
    %c0_i32_0 = arith.constant 0 : i32
    return %arg0, %c0_i32 : i32, i32
  }
}

</mosaic_0001>

<llo_original>
// kernel: block_forward.2
$region0: #{block_forward.2}
  #allocation0 [shape = 'u32[]', space=smem, size = 0x4, offset = 0x4, fixed_abs, tag = 'smem constant byte address 0x4 - core index']
  #allocation1 [shape = 'u32[144,128]{1,0:T(1,128)}', space=vmem, size = 0x12000, scoped, tag = 'internal scratch']
  %s0 = inlined_call_operand.vmem [shape: f32[128,36], index: 0, kind: input, shape index: {}]
  %s1 = inlined_call_operand.vmem [shape: f32[36,128], index: 1, kind: input, shape index: {}]
  %s2 = inlined_call_operand.vmem [shape: f32[1,128], index: 2, kind: input, shape index: {}]
  %s3 = inlined_call_operand.vmem [shape: f32[128,128], index: 3, kind: output, shape index: {}]
  %s4 = sld [smem:[#allocation0]]
  $region22: #{block_forward.2} parent=0
    _
  %s6 = ssub.s32 1, %s4
  %s7 = scalar_select 0, %s6, %s4
  // Predicated region
  $region2: #{block_forward.2} parent=0 // pred_check
    _
  $region3: #{block_forward.2} parent=0 // pred_check_branch
    %9 = sbr.rel (0) target = $region5
  $region4: #{block_forward.2} parent=0 // pred_region
    _
  $region5: #{block_forward.2} parent=0 // pred_fallthru
    _
  // Predicated region
  $region6: #{block_forward.2} parent=0 // pred_check
    _
  $region7: #{block_forward.2} parent=0 // pred_check_branch
    %11 = sbr.rel (0) target = $region9
  $region8: #{block_forward.2} parent=0 // pred_region
    _
  $region9: #{block_forward.2} parent=0 // pred_fallthru
    _
  // Predicated region
  $region10: #{block_forward.2} parent=0 // pred_check
    _
  $region11: #{block_forward.2} parent=0 // pred_check_branch
    %13 = sbr.rel (0) target = $region13
  $region12: #{block_forward.2} parent=0 // pred_region
    _
  $region13: #{block_forward.2} parent=0 // pred_fallthru
    _
  %v14 = vld [vmem:[%s0] sm:$0xff]
  %v15 = vld [vmem:[%s0 + $0x8] sm:$0xff]
  %v16 = vld [vmem:[%s0 + $0x10] sm:$0xff]
  %v17 = vld [vmem:[%s0 + $0x18] sm:$0xff]
  %v18 = vld [vmem:[%s0 + $0x20] sm:$0xff]
  %v19 = vld [vmem:[%s0 + $0x28] sm:$0xff]
  %v20 = vld [vmem:[%s0 + $0x30] sm:$0xff]
  %v21 = vld [vmem:[%s0 + $0x38] sm:$0xff]
  %v22 = vld [vmem:[%s0 + $0x40] sm:$0xff]
  %v23 = vld [vmem:[%s0 + $0x48] sm:$0xff]
  %v24 = vld [vmem:[%s0 + $0x50] sm:$0xff]
  %v25 = vld [vmem:[%s0 + $0x58] sm:$0xff]
  %v26 = vld [vmem:[%s0 + $0x60] sm:$0xff]
  %v27 = vld [vmem:[%s0 + $0x68] sm:$0xff]
  %v28 = vld [vmem:[%s0 + $0x70] sm:$0xff]
  %v29 = vld [vmem:[%s0 + $0x78] sm:$0xff]
  %v30 = vld [vmem:[%s1] sm:$0xff]
  %v31 = vld [vmem:[%s1 + $0x8] sm:$0xff]
  %v32 = vld [vmem:[%s1 + $0x10] sm:$0xff]
  %v33 = vld [vmem:[%s1 + $0x18] sm:$0xff]
  %v34 = vld [vmem:[%s1 + $0x20] sm:$0xf]
  %v35 = vld [vmem:[%s2] sm:$0x1]
  %v37 = vlaneseq
  %v38 = vshrl.u32 %v37, 7
  %v39 = vsub.s32 0, %v38
  %v40 = vrot.slane %v35, %v39
  %vm42 = vcmask 293888
  %v44 = vsel %vm42, %v14, 0
  %v47 = vsel %vm42, %v15, 0
  %v50 = vsel %vm42, %v16, 0
  %v53 = vsel %vm42, %v17, 0
  %v56 = vsel %vm42, %v18, 0
  %v59 = vsel %vm42, %v19, 0
  %v62 = vsel %vm42, %v20, 0
  %v65 = vsel %vm42, %v21, 0
  %v68 = vsel %vm42, %v22, 0
  %v71 = vsel %vm42, %v23, 0
  %v74 = vsel %vm42, %v24, 0
  %v77 = vsel %vm42, %v25, 0
  %v80 = vsel %vm42, %v26, 0
  %v83 = vsel %vm42, %v27, 0
  %v86 = vsel %vm42, %v28, 0
  %v89 = vsel %vm42, %v29, 0
  %vm91 = vcmask 1043456
  %v93 = vsel %vm91, %v34, 0
  %95 = vmatprep.subr.mxu0 0.0
  %96 = vmatpush1.msra.mxu0 %v30
  %97 = vmatprep.subr.mxu0 0.0
  %98 = vmatpush1.msra.mxu0 %v31
  %99 = vmatprep.subr.mxu0 0.0
  %100 = vmatpush1.msra.mxu0 %v32
  %101 = vmatprep.subr.mxu0 0.0
  %102 = vmatpush1.msra.mxu0 %v33
  %103 = vmatprep.subr.mxu0 0.0
  %104 = vmatpush1.msra.mxu0 %v93
  %105 = vmatprep.subr.mxu0 0.0
  %106 = vmatpush1.msra.mxu0 0.0
  %107 = vmatprep.subr.mxu0 0.0
  %108 = vmatpush1.msra.mxu0 0.0
  %109 = vmatprep.subr.mxu0 0.0
  %110 = vmatpush1.msra.mxu0 0.0
  %111 = vmatprep.subr.mxu0 0.0
  %112 = vmatpush1.msra.mxu0 0.0
  %113 = vmatprep.subr.mxu0 0.0
  %114 = vmatpush1.msra.mxu0 0.0
  %115 = vmatprep.subr.mxu0 0.0
  %116 = vmatpush1.msra.mxu0 0.0
  %117 = vmatprep.subr.mxu0 0.0
  %118 = vmatpush1.msra.mxu0 0.0
  %119 = vmatprep.subr.mxu0 0.0
  %120 = vmatpush1.msra.mxu0 0.0
  %121 = vmatprep.subr.mxu0 0.0
  %122 = vmatpush1.msra.mxu0 0.0
  %123 = vmatprep.subr.mxu0 0.0
  %124 = vmatpush1.msra.mxu0 0.0
  %125 = vmatprep.subr.mxu0 0.0
  %126 = vmatpush1.msra.mxu0 0.0
  %127 = vmatprep.subr.mxu0 0.0
  %128 = vmatpush1.msra.mxu0 0.0
  %129 = vmatprep.subr.mxu0 0.0
  %130 = vmatpush1.msra.mxu0 0.0
  %131 = vmatprep.subr.mxu0 0.0
  %132 = vmatpush1.msra.mxu0 0.0
  %133 = vmatprep.subr.mxu0 0.0
  %134 = vmatpush1.msra.mxu0 0.0
  %135 = vmatprep.subr.mxu0 0.0
  %136 = vmatpush1.msra.mxu0 0.0
  %137 = vmatprep.subr.mxu0 0.0
  %138 = vmatpush1.msra.mxu0 0.0
  %139 = vmatprep.subr.mxu0 0.0
  %140 = vmatpush1.msra.mxu0 0.0
  %141 = vmatprep.subr.mxu0 0.0
  %142 = vmatpush1.msra.mxu0 0.0
  %143 = vmatprep.subr.mxu0 0.0
  %144 = vmatpush1.msra.mxu0 0.0
  %145 = vmatprep.subr.mxu0 0.0
  %146 = vmatpush1.msra.mxu0 0.0
  %147 = vmatprep.subr.mxu0 0.0
  %148 = vmatpush1.msra.mxu0 0.0
  %149 = vmatprep.subr.mxu0 0.0
  %150 = vmatpush1.msra.mxu0 0.0
  %151 = vmatprep.subr.mxu0 0.0
  %152 = vmatpush1.msra.mxu0 0.0
  %153 = vmatprep.subr.mxu0 0.0
  %154 = vmatpush1.msra.mxu0 0.0
  %155 = vmatprep.subr.mxu0 0.0
  %156 = vmatpush1.msra.mxu0 0.0
  %157 = vmatprep.subr.mxu0 0.0
  %158 = vmatpush1.msra.mxu0 0.0
  %159 = vmatprep.mubr.f32.mxu0 0.0
  %160 = vmatmul.mubr.f32.gmra.mrb[0].mxu0 %v44
  %v161 = vpop.f32.mrb[0].mxu0
  %v162 = vadd.f32 %v40, %v161
  %v163 = vpop.f32.mrb[0].mxu0
  %164 = vmatprep.mubr.f32.mxu0 0.0
  %165 = vmatmul.mubr.f32.gmra.mrb[0].mxu0 %v47
  %v166 = vpop.f32.mrb[0].mxu0
  %v167 = vadd.f32 %v40, %v166
  %v168 = vpop.f32.mrb[0].mxu0
  %169 = vmatprep.mubr.f32.mxu0 0.0
  %170 = vmatmul.mubr.f32.gmra.mrb[0].mxu0 %v50
  %v171 = vpop.f32.mrb[0].mxu0
  %v172 = vadd.f32 %v40, %v171
  %v173 = vpop.f32.mrb[0].mxu0
  %174 = vmatprep.mubr.f32.mxu0 0.0
  %175 = vmatmul.mubr.f32.gmra.mrb[0].mxu0 %v53
  %v176 = vpop.f32.mrb[0].mxu0
  %v177 = vadd.f32 %v40, %v176
  %v178 = vpop.f32.mrb[0].mxu0
  %179 = vmatprep.mubr.f32.mxu0 0.0
  %180 = vmatmul.mubr.f32.gmra.mrb[0].mxu0 %v56
  %v181 = vpop.f32.mrb[0].mxu0
  %v182 = vadd.f32 %v40, %v181
  %v183 = vpop.f32.mrb[0].mxu0
  %184 = vmatprep.mubr.f32.mxu0 0.0
  %185 = vmatmul.mubr.f32.gmra.mrb[0].mxu0 %v59
  %v186 = vpop.f32.mrb[0].mxu0
  %v187 = vadd.f32 %v40, %v186
  %v188 = vpop.f32.mrb[0].mxu0
  %189 = vmatprep.mubr.f32.mxu0 0.0
  %190 = vmatmul.mubr.f32.gmra.mrb[0].mxu0 %v62
  %v191 = vpop.f32.mrb[0].mxu0
  %v192 = vadd.f32 %v40, %v191
  %v193 = vpop.f32.mrb[0].mxu0
  %194 = vmatprep.mubr.f32.mxu0 0.0
  %195 = vmatmul.mubr.f32.gmra.mrb[0].mxu0 %v65
  %v196 = vpop.f32.mrb[0].mxu0
  %v197 = vadd.f32 %v40, %v196
  %v198 = vpop.f32.mrb[0].mxu0
  %199 = vmatprep.mubr.f32.mxu0 0.0
  %200 = vmatmul.mubr.f32.gmra.mrb[0].mxu0 %v68
  %v201 = vpop.f32.mrb[0].mxu0
  %v202 = vadd.f32 %v40, %v201
  %v203 = vpop.f32.mrb[0].mxu0
  %204 = vmatprep.mubr.f32.mxu0 0.0
  %205 = vmatmul.mubr.f32.gmra.mrb[0].mxu0 %v71
  %v206 = vpop.f32.mrb[0].mxu0
  %v207 = vadd.f32 %v40, %v206
  %v208 = vpop.f32.mrb[0].mxu0
  %209 = vmatprep.mubr.f32.mxu0 0.0
  %210 = vmatmul.mubr.f32.gmra.mrb[0].mxu0 %v74
  %v211 = vpop.f32.mrb[0].mxu0
  %v212 = vadd.f32 %v40, %v211
  %v213 = vpop.f32.mrb[0].mxu0
  %214 = vmatprep.mubr.f32.mxu0 0.0
  %215 = vmatmul.mubr.f32.gmra.mrb[0].mxu0 %v77
  %v216 = vpop.f32.mrb[0].mxu0
  %v217 = vadd.f32 %v40, %v216
  %v218 = vpop.f32.mrb[0].mxu0
  %219 = vmatprep.mubr.f32.mxu0 0.0
  %220 = vmatmul.mubr.f32.gmra.mrb[0].mxu0 %v80
  %v221 = vpop.f32.mrb[0].mxu0
  %v222 = vadd.f32 %v40, %v221
  %v223 = vpop.f32.mrb[0].mxu0
  %224 = vmatprep.mubr.f32.mxu0 0.0
  %225 = vmatmul.mubr.f32.gmra.mrb[0].mxu0 %v83
  %v226 = vpop.f32.mrb[0].mxu0
  %v227 = vadd.f32 %v40, %v226
  %v228 = vpop.f32.mrb[0].mxu0
  %229 = vmatprep.mubr.f32.mxu0 0.0
  %230 = vmatmul.mubr.f32.gmra.mrb[0].mxu0 %v86
  %v231 = vpop.f32.mrb[0].mxu0
  %v232 = vadd.f32 %v40, %v231
  %v233 = vpop.f32.mrb[0].mxu0
  %234 = vmatprep.mubr.f32.mxu0 0.0
  %235 = vmatmul.mubr.f32.gmra.mrb[0].mxu0 %v89
  %v236 = vpop.f32.mrb[0].mxu0
  %v237 = vadd.f32 %v40, %v236
  %v238 = vpop.f32.mrb[0].mxu0
  %239 = vdwg.mxu0
  %v240 = vmax.f32 %v162, 0.0
  %v241 = vmax.f32 %v167, 0.0
  %v242 = vmax.f32 %v172, 0.0
  %v243 = vmax.f32 %v177, 0.0
  %v244 = vmax.f32 %v182, 0.0
  %v245 = vmax.f32 %v187, 0.0
  %v246 = vmax.f32 %v192, 0.0
  %v247 = vmax.f32 %v197, 0.0
  %v248 = vmax.f32 %v202, 0.0
  %v249 = vmax.f32 %v207, 0.0
  %v250 = vmax.f32 %v212, 0.0
  %v251 = vmax.f32 %v217, 0.0
  %v252 = vmax.f32 %v222, 0.0
  %v253 = vmax.f32 %v227, 0.0
  %v254 = vmax.f32 %v232, 0.0
  %v255 = vmax.f32 %v237, 0.0
  %256 = vst [vmem:[%s3] sm:$0xff] %v240
  %257 = vst [vmem:[%s3 + $0x8] sm:$0xff] %v241
  %258 = vst [vmem:[%s3 + $0x10] sm:$0xff] %v242
  %259 = vst [vmem:[%s3 + $0x18] sm:$0xff] %v243
  %260 = vst [vmem:[%s3 + $0x20] sm:$0xff] %v244
  %261 = vst [vmem:[%s3 + $0x28] sm:$0xff] %v245
  %262 = vst [vmem:[%s3 + $0x30] sm:$0xff] %v246
  %263 = vst [vmem:[%s3 + $0x38] sm:$0xff] %v247
  %264 = vst [vmem:[%s3 + $0x40] sm:$0xff] %v248
  %265 = vst [vmem:[%s3 + $0x48] sm:$0xff] %v249
  %266 = vst [vmem:[%s3 + $0x50] sm:$0xff] %v250
  %267 = vst [vmem:[%s3 + $0x58] sm:$0xff] %v251
  %268 = vst [vmem:[%s3 + $0x60] sm:$0xff] %v252
  %269 = vst [vmem:[%s3 + $0x68] sm:$0xff] %v253
  %270 = vst [vmem:[%s3 + $0x70] sm:$0xff] %v254
  %271 = vst [vmem:[%s3 + $0x78] sm:$0xff] %v255
  // Predicated region
  $region14: #{block_forward.2} parent=0 // pred_check
    _
  $region15: #{block_forward.2} parent=0 // pred_check_branch
    %273 = sbr.rel (0) target = $region17
  $region16: #{block_forward.2} parent=0 // pred_region
    _
  $region17: #{block_forward.2} parent=0 // pred_fallthru
    _
  // Predicated region
  $region18: #{block_forward.2} parent=0 // pred_check
    _
  $region19: #{block_forward.2} parent=0 // pred_check_branch
    %275 = sbr.rel (0) target = $region21
  $region20: #{block_forward.2} parent=0 // pred_region
    _
  $region21: #{block_forward.2} parent=0 // pred_fallthru
    _

// kernel: block_forward.3
$region0: #{block_forward.3}
  #allocation0 [shape = 'u32[]', space=smem, size = 0x4, offset = 0x4, fixed_abs, tag = 'smem constant byte address 0x4 - core index']
  #allocation1 [shape = 'u32[144,128]{1,0:T(1,128)}', space=vmem, size = 0x12000, scoped, tag = 'internal scratch']
  %s0 = inlined_call_operand.vmem [shape: f32[128,76], index: 0, kind: input, shape index: {}]
  %s1 = inlined_call_operand.vmem [shape: f32[76,128], index: 1, kind: input, shape index: {}]
  %s2 = inlined_call_operand.vmem [shape: f32[1,128], index: 2, kind: input, shape index: {}]
  %s3 = inlined_call_operand.hbm [shape: f32[128,128], index: 3, kind: output, shape index: {}]
  %s4 = sld [smem:[#allocation0]]
  $region22: #{block_forward.3} parent=0
    _
  %s6 = ssub.s32 1, %s4
  %s7 = scalar_select 0, %s6, %s4
  $region1: #{block_forward.3} parent=0
    #allocation2 [shape = 'u8[65536]{0}', space=vmem, size = 0x10000, scoped, tag = 'output window, operand 0, single buffered']
    #allocation3 [shape = 's32[1]{0}', space=sflag, size = 0x4, scoped, tag = 'scoped memory for block_forward.3']
    %8 = vsyncpa [#allocation3], 0
    // Predicated region
    $region2: #{block_forward.3} parent=1 // pred_check
      _
    $region3: #{block_forward.3} parent=1 // pred_check_branch
      %10 = sbr.rel (0) target = $region5
    $region4: #{block_forward.3} parent=1 // pred_region
      _
    $region5: #{block_forward.3} parent=1 // pred_fallthru
      _
    // Predicated region
    $region6: #{block_forward.3} parent=1 // pred_check
      _
    $region7: #{block_forward.3} parent=1 // pred_check_branch
      %12 = sbr.rel (0) target = $region9
    $region8: #{block_forward.3} parent=1 // pred_region
      _
    $region9: #{block_forward.3} parent=1 // pred_fallthru
      _
    // Predicated region
    $region10: #{block_forward.3} parent=1 // pred_check
      _
    $region11: #{block_forward.3} parent=1 // pred_check_branch
      %14 = sbr.rel (0) target = $region13
    $region12: #{block_forward.3} parent=1 // pred_region
      _
    $region13: #{block_forward.3} parent=1 // pred_fallthru
      _
    %v15 = vld [vmem:[%s0] sm:$0xff]
    %v16 = vld [vmem:[%s0 + $0x8] sm:$0xff]
    %v17 = vld [vmem:[%s0 + $0x10] sm:$0xff]
    %v18 = vld [vmem:[%s0 + $0x18] sm:$0xff]
    %v19 = vld [vmem:[%s0 + $0x20] sm:$0xff]
    %v20 = vld [vmem:[%s0 + $0x28] sm:$0xff]
    %v21 = vld [vmem:[%s0 + $0x30] sm:$0xff]
    %v22 = vld [vmem:[%s0 + $0x38] sm:$0xff]
    %v23 = vld [vmem:[%s0 + $0x40] sm:$0xff]
    %v24 = vld [vmem:[%s0 + $0x48] sm:$0xff]
    %v25 = vld [vmem:[%s0 + $0x50] sm:$0xff]
    %v26 = vld [vmem:[%s0 + $0x58] sm:$0xff]
    %v27 = vld [vmem:[%s0 + $0x60] sm:$0xff]
    %v28 = vld [vmem:[%s0 + $0x68] sm:$0xff]
    %v29 = vld [vmem:[%s0 + $0x70] sm:$0xff]
    %v30 = vld [vmem:[%s0 + $0x78] sm:$0xff]
    %v31 = vld [vmem:[%s1] sm:$0xff]
    %v32 = vld [vmem:[%s1 + $0x8] sm:$0xff]
    %v33 = vld [vmem:[%s1 + $0x10] sm:$0xff]
    %v34 = vld [vmem:[%s1 + $0x18] sm:$0xff]
    %v35 = vld [vmem:[%s1 + $0x20] sm:$0xff]
    %v36 = vld [vmem:[%s1 + $0x28] sm:$0xff]
    %v37 = vld [vmem:[%s1 + $0x30] sm:$0xff]
    %v38 = vld [vmem:[%s1 + $0x38] sm:$0xff]
    %v39 = vld [vmem:[%s1 + $0x40] sm:$0xff]
    %v40 = vld [vmem:[%s1 + $0x48] sm:$0xf]
    %v41 = vld [vmem:[%s2] sm:$0x1]
    %v43 = vlaneseq
    %v44 = vshrl.u32 %v43, 7
    %v45 = vsub.s32 0, %v44
    %v46 = vrot.slane %v41, %v45
    %vm48 = vcmask 621568
    %v50 = vsel %vm48, %v15, 0
    %v53 = vsel %vm48, %v16, 0
    %v56 = vsel %vm48, %v17, 0
    %v59 = vsel %vm48, %v18, 0
    %v62 = vsel %vm48, %v19, 0
    %v65 = vsel %vm48, %v20, 0
    %v68 = vsel %vm48, %v21, 0
    %v71 = vsel %vm48, %v22, 0
    %v74 = vsel %vm48, %v23, 0
    %v77 = vsel %vm48, %v24, 0
    %v80 = vsel %vm48, %v25, 0
    %v83 = vsel %vm48, %v26, 0
    %v86 = vsel %vm48, %v27, 0
    %v89 = vsel %vm48, %v28, 0
    %v92 = vsel %vm48, %v29, 0
    %v95 = vsel %vm48, %v30, 0
    %vm97 = vcmask 1043456
    %v99 = vsel %vm97, %v40, 0
    %101 = vmatprep.subr.mxu0 0.0
    %102 = vmatpush1.msra.mxu0 %v31
    %103 = vmatprep.subr.mxu0 0.0
    %104 = vmatpush1.msra.mxu0 %v32
    %105 = vmatprep.subr.mxu0 0.0
    %106 = vmatpush1.msra.mxu0 %v33
    %107 = vmatprep.subr.mxu0 0.0
    %108 = vmatpush1.msra.mxu0 %v34
    %109 = vmatprep.subr.mxu0 0.0
    %110 = vmatpush1.msra.mxu0 %v35
    %111 = vmatprep.subr.mxu0 0.0
    %112 = vmatpush1.msra.mxu0 %v36
    %113 = vmatprep.subr.mxu0 0.0
    %114 = vmatpush1.msra.mxu0 %v37
    %115 = vmatprep.subr.mxu0 0.0
    %116 = vmatpush1.msra.mxu0 %v38
    %117 = vmatprep.subr.mxu0 0.0
    %118 = vmatpush1.msra.mxu0 %v39
    %119 = vmatprep.subr.mxu0 0.0
    %120 = vmatpush1.msra.mxu0 %v99
    %121 = vmatprep.subr.mxu0 0.0
    %122 = vmatpush1.msra.mxu0 0.0
    %123 = vmatprep.subr.mxu0 0.0
    %124 = vmatpush1.msra.mxu0 0.0
    %125 = vmatprep.subr.mxu0 0.0
    %126 = vmatpush1.msra.mxu0 0.0
    %127 = vmatprep.subr.mxu0 0.0
    %128 = vmatpush1.msra.mxu0 0.0
    %129 = vmatprep.subr.mxu0 0.0
    %130 = vmatpush1.msra.mxu0 0.0
    %131 = vmatprep.subr.mxu0 0.0
    %132 = vmatpush1.msra.mxu0 0.0
    %133 = vmatprep.subr.mxu0 0.0
    %134 = vmatpush1.msra.mxu0 0.0
    %135 = vmatprep.subr.mxu0 0.0
    %136 = vmatpush1.msra.mxu0 0.0
    %137 = vmatprep.subr.mxu0 0.0
    %138 = vmatpush1.msra.mxu0 0.0
    %139 = vmatprep.subr.mxu0 0.0
    %140 = vmatpush1.msra.mxu0 0.0
    %141 = vmatprep.subr.mxu0 0.0
    %142 = vmatpush1.msra.mxu0 0.0
    %143 = vmatprep.subr.mxu0 0.0
    %144 = vmatpush1.msra.mxu0 0.0
    %145 = vmatprep.subr.mxu0 0.0
    %146 = vmatpush1.msra.mxu0 0.0
    %147 = vmatprep.subr.mxu0 0.0
    %148 = vmatpush1.msra.mxu0 0.0
    %149 = vmatprep.subr.mxu0 0.0
    %150 = vmatpush1.msra.mxu0 0.0
    %151 = vmatprep.subr.mxu0 0.0
    %152 = vmatpush1.msra.mxu0 0.0
    %153 = vmatprep.subr.mxu0 0.0
    %154 = vmatpush1.msra.mxu0 0.0
    %155 = vmatprep.subr.mxu0 0.0
    %156 = vmatpush1.msra.mxu0 0.0
    %157 = vmatprep.subr.mxu0 0.0
    %158 = vmatpush1.msra.mxu0 0.0
    %159 = vmatprep.subr.mxu0 0.0
    %160 = vmatpush1.msra.mxu0 0.0
    %161 = vmatprep.subr.mxu0 0.0
    %162 = vmatpush1.msra.mxu0 0.0
    %163 = vmatprep.subr.mxu0 0.0
    %164 = vmatpush1.msra.mxu0 0.0
    %165 = vmatprep.mubr.f32.mxu0 0.0
    %166 = vmatmul.mubr.f32.gmra.mrb[0].mxu0 %v50
    %v167 = vpop.f32.mrb[0].mxu0
    %v168 = vadd.f32 %v46, %v167
    %v169 = vpop.f32.mrb[0].mxu0
    %170 = vmatprep.mubr.f32.mxu0 0.0
    %171 = vmatmul.mubr.f32.gmra.mrb[0].mxu0 %v53
    %v172 = vpop.f32.mrb[0].mxu0
    %v173 = vadd.f32 %v46, %v172
    %v174 = vpop.f32.mrb[0].mxu0
    %175 = vmatprep.mubr.f32.mxu0 0.0
    %176 = vmatmul.mubr.f32.gmra.mrb[0].mxu0 %v56
    %v177 = vpop.f32.mrb[0].mxu0
    %v178 = vadd.f32 %v46, %v177
    %v179 = vpop.f32.mrb[0].mxu0
    %180 = vmatprep.mubr.f32.mxu0 0.0
    %181 = vmatmul.mubr.f32.gmra.mrb[0].mxu0 %v59
    %v182 = vpop.f32.mrb[0].mxu0
    %v183 = vadd.f32 %v46, %v182
    %v184 = vpop.f32.mrb[0].mxu0
    %185 = vmatprep.mubr.f32.mxu0 0.0
    %186 = vmatmul.mubr.f32.gmra.mrb[0].mxu0 %v62
    %v187 = vpop.f32.mrb[0].mxu0
    %v188 = vadd.f32 %v46, %v187
    %v189 = vpop.f32.mrb[0].mxu0
    %190 = vmatprep.mubr.f32.mxu0 0.0
    %191 = vmatmul.mubr.f32.gmra.mrb[0].mxu0 %v65
    %v192 = vpop.f32.mrb[0].mxu0
    %v193 = vadd.f32 %v46, %v192
    %v194 = vpop.f32.mrb[0].mxu0
    %195 = vmatprep.mubr.f32.mxu0 0.0
    %196 = vmatmul.mubr.f32.gmra.mrb[0].mxu0 %v68
    %v197 = vpop.f32.mrb[0].mxu0
    %v198 = vadd.f32 %v46, %v197
    %v199 = vpop.f32.mrb[0].mxu0
    %200 = vmatprep.mubr.f32.mxu0 0.0
    %201 = vmatmul.mubr.f32.gmra.mrb[0].mxu0 %v71
    %v202 = vpop.f32.mrb[0].mxu0
    %v203 = vadd.f32 %v46, %v202
    %v204 = vpop.f32.mrb[0].mxu0
    %205 = vmatprep.mubr.f32.mxu0 0.0
    %206 = vmatmul.mubr.f32.gmra.mrb[0].mxu0 %v74
    %v207 = vpop.f32.mrb[0].mxu0
    %v208 = vadd.f32 %v46, %v207
    %v209 = vpop.f32.mrb[0].mxu0
    %210 = vmatprep.mubr.f32.mxu0 0.0
    %211 = vmatmul.mubr.f32.gmra.mrb[0].mxu0 %v77
    %v212 = vpop.f32.mrb[0].mxu0
    %v213 = vadd.f32 %v46, %v212
    %v214 = vpop.f32.mrb[0].mxu0
    %215 = vmatprep.mubr.f32.mxu0 0.0
    %216 = vmatmul.mubr.f32.gmra.mrb[0].mxu0 %v80
    %v217 = vpop.f32.mrb[0].mxu0
    %v218 = vadd.f32 %v46, %v217
    %v219 = vpop.f32.mrb[0].mxu0
    %220 = vmatprep.mubr.f32.mxu0 0.0
    %221 = vmatmul.mubr.f32.gmra.mrb[0].mxu0 %v83
    %v222 = vpop.f32.mrb[0].mxu0
    %v223 = vadd.f32 %v46, %v222
    %v224 = vpop.f32.mrb[0].mxu0
    %225 = vmatprep.mubr.f32.mxu0 0.0
    %226 = vmatmul.mubr.f32.gmra.mrb[0].mxu0 %v86
    %v227 = vpop.f32.mrb[0].mxu0
    %v228 = vadd.f32 %v46, %v227
    %v229 = vpop.f32.mrb[0].mxu0
    %230 = vmatprep.mubr.f32.mxu0 0.0
    %231 = vmatmul.mubr.f32.gmra.mrb[0].mxu0 %v89
    %v232 = vpop.f32.mrb[0].mxu0
    %v233 = vadd.f32 %v46, %v232
    %v234 = vpop.f32.mrb[0].mxu0
    %235 = vmatprep.mubr.f32.mxu0 0.0
    %236 = vmatmul.mubr.f32.gmra.mrb[0].mxu0 %v92
    %v237 = vpop.f32.mrb[0].mxu0
    %v238 = vadd.f32 %v46, %v237
    %v239 = vpop.f32.mrb[0].mxu0
    %240 = vmatprep.mubr.f32.mxu0 0.0
    %241 = vmatmul.mubr.f32.gmra.mrb[0].mxu0 %v95
    %v242 = vpop.f32.mrb[0].mxu0
    %v243 = vadd.f32 %v46, %v242
    %v244 = vpop.f32.mrb[0].mxu0
    %245 = vdwg.mxu0
    %v246 = vmax.f32 %v168, 0.0
    %v247 = vmax.f32 %v173, 0.0
    %v248 = vmax.f32 %v178, 0.0
    %v249 = vmax.f32 %v183, 0.0
    %v250 = vmax.f32 %v188, 0.0
    %v251 = vmax.f32 %v193, 0.0
    %v252 = vmax.f32 %v198, 0.0
    %v253 = vmax.f32 %v203, 0.0
    %v254 = vmax.f32 %v208, 0.0
    %v255 = vmax.f32 %v213, 0.0
    %v256 = vmax.f32 %v218, 0.0
    %v257 = vmax.f32 %v223, 0.0
    %v258 = vmax.f32 %v228, 0.0
    %v259 = vmax.f32 %v233, 0.0
    %v260 = vmax.f32 %v238, 0.0
    %v261 = vmax.f32 %v243, 0.0
    %262 = vst [vmem:[#allocation2] sm:$0xff] %v246
    %263 = vst [vmem:[#allocation2 + $0x8] sm:$0xff] %v247
    %264 = vst [vmem:[#allocation2 + $0x10] sm:$0xff] %v248
    %265 = vst [vmem:[#allocation2 + $0x18] sm:$0xff] %v249
    %266 = vst [vmem:[#allocation2 + $0x20] sm:$0xff] %v250
    %267 = vst [vmem:[#allocation2 + $0x28] sm:$0xff] %v251
    %268 = vst [vmem:[#allocation2 + $0x30] sm:$0xff] %v252
    %269 = vst [vmem:[#allocation2 + $0x38] sm:$0xff] %v253
    %270 = vst [vmem:[#allocation2 + $0x40] sm:$0xff] %v254
    %271 = vst [vmem:[#allocation2 + $0x48] sm:$0xff] %v255
    %272 = vst [vmem:[#allocation2 + $0x50] sm:$0xff] %v256
    %273 = vst [vmem:[#allocation2 + $0x58] sm:$0xff] %v257
    %274 = vst [vmem:[#allocation2 + $0x60] sm:$0xff] %v258
    %275 = vst [vmem:[#allocation2 + $0x68] sm:$0xff] %v259
    %276 = vst [vmem:[#allocation2 + $0x70] sm:$0xff] %v260
    %277 = vst [vmem:[#allocation2 + $0x78] sm:$0xff] %v261
    // Predicated region
    $region14: #{block_forward.3} parent=1 // pred_check
      _
    $region15: #{block_forward.3} parent=1 // pred_check_branch
      %279 = sbr.rel (0) target = $region17
    $region16: #{block_forward.3} parent=1 // pred_region
      %s281 = ssub.s32 2048, 2048
      %282 = vsyncadd [#allocation3], %s281
      %s283 = sshll.u32 [#allocation2], 4
      %s284 = int_to_ptr.vmem [resolvable:$true] %s283
      %289 = dma.vmem_to_hbm [thread:$0]  %s284, 2048, %s3, [#allocation3], 128, 128, 8
    $region17: #{block_forward.3} parent=1 // pred_fallthru
      _
    // Predicated region
    $region18: #{block_forward.3} parent=1 // pred_check
      _
    $region19: #{block_forward.3} parent=1 // pred_check_branch
      %291 = sbr.rel (0) target = $region21
    $region20: #{block_forward.3} parent=1 // pred_region
      %292 = dma.done [#allocation3], 2048
    $region21: #{block_forward.3} parent=1 // pred_fallthru
      _
    %293 = vsyncpa [#allocation3], 1

</llo_original>
